<compile_context>
chip_gen: v5e
topology: v5e:2x2
jax: 0.10.0
libtpu: 0.0.40
codegen_flags: <defaults>
</compile_context>

<pallas_src>
import jax
import jax.numpy as jnp
from jax.experimental import pallas as pl
from jax.experimental.pallas import tpu as pltpu


def mlp_kernel(x_ref, w1_ref, b1_ref, w2_ref, b2_ref, w3_ref, b3_ref, o_ref):
    # x_ref: (TM, 1) f32 batch tile
    x = x_ref[...]

    # fc1 + ReLU as a broadcast outer product on the VPU:
    # (TM,1) * (1,128) + (1,128) -> (TM,128). Keeps the degenerate K=1
    # contraction off the MXU.
    h1 = jnp.maximum(x * w1_ref[...] + b1_ref[...], 0.0)

    # fc2 + ReLU: the only real matmul. bf16 inputs, f32 accumulation (MXU).
    h2 = jnp.dot(h1.astype(jnp.bfloat16), w2_ref[...],
                 preferred_element_type=jnp.float32)
    h2 = jnp.maximum(h2 + b2_ref[...], 0.0)

    # fc3 (no activation) as VPU multiply + lane reduce: (TM,128)*(1,128)
    # summed over lanes -> (TM,1). Keeps the N=1 matmul off the MXU.
    out = jnp.sum(h2 * w3_ref[...], axis=-1, keepdims=True) + b3_ref[0]
    o_ref[...] = out.astype(o_ref.dtype)


def _round_up(n, m):
    return (n + m - 1) // m * m


def net_forward(x, params, *, block_m=512):
    """x: (B, 1) f32.  params: (w1, b1, w2_bf16, b2, w3_row, b3)."""
    w1, b1, w2, b2, w3, b3 = params
    B = x.shape[0]

    # Batch tile: multiple of 8 (sublane), capped by block_m.
    TM = min(block_m, _round_up(B, 8))
    Bp = _round_up(B, TM)
    if Bp != B:
        x = jnp.pad(x, ((0, Bp - B), (0, 0)))

    grid = (Bp // TM,)

    flops = 2 * Bp * 128 * 128 + 4 * Bp * 128
    bytes_accessed = (
        Bp * 4 * 2                                   # x in + y out
        + w2.size * w2.dtype.itemsize                # bf16 weight
        + (w1.size + b1.size + b2.size + w3.size + b3.size) * 4
    )

    out = pl.pallas_call(
        mlp_kernel,
        out_shape=jax.ShapeDtypeStruct((Bp, 1), jnp.float32),
        grid=grid,
        in_specs=[
            pl.BlockSpec((TM, 1), lambda i: (i, 0)),        # x: batch-tiled
            pl.BlockSpec((1, 128), lambda i: (0, 0)),       # w1 row (resident)
            pl.BlockSpec((1, 128), lambda i: (0, 0)),       # b1     (resident)
            pl.BlockSpec((128, 128), lambda i: (0, 0)),     # w2 bf16 (resident)
            pl.BlockSpec((1, 128), lambda i: (0, 0)),       # b2     (resident)
            pl.BlockSpec((1, 128), lambda i: (0, 0)),       # w3 row (resident)
            pl.BlockSpec(memory_space=pltpu.MemorySpace.SMEM),  # b3 scalar
        ],
        out_specs=pl.BlockSpec((TM, 1), lambda i: (i, 0)),
        compiler_params=pltpu.CompilerParams(
            dimension_semantics=("parallel",),
        ),
        cost_estimate=pl.CostEstimate(
            flops=flops, transcendentals=0, bytes_accessed=bytes_accessed),
    )(x, w1, b1, w2, b2, w3, b3)

    return out[:B]


def init_params(key):
    """Deterministic init mimicking PyTorch nn.Linear defaults
    (uniform(-1/sqrt(fan_in), 1/sqrt(fan_in)))."""
    def linear(key, fan_in, fan_out):
        kw, kb = jax.random.split(key)
        bound = 1.0 / jnp.sqrt(jnp.float32(fan_in))
        w = jax.random.uniform(kw, (fan_in, fan_out), jnp.float32, -bound, bound)
        b = jax.random.uniform(kb, (fan_out,), jnp.float32, -bound, bound)
        return w, b

    k1, k2, k3 = jax.random.split(key, 3)
    w1, b1 = linear(k1, 1, 128)      # (1,128), (128,)
    w2, b2 = linear(k2, 128, 128)    # (128,128), (128,)
    w3, b3 = linear(k3, 128, 1)      # (128,1), (1,)

    return (
        w1,                               # (1, 128) f32
        b1.reshape(1, 128),               # (1, 128) f32
        w2.astype(jnp.bfloat16),          # (128, 128) bf16 weight
        b2.reshape(1, 128),               # (1, 128) f32
        w3.reshape(1, 128),               # (1, 128) f32 row (transposed fc3)
        b3.reshape(1,),                   # (1,) f32 scalar, lives in SMEM
    )


if __name__ == "__main__":
    key = jax.random.PRNGKey(0)
    kp, kx = jax.random.split(key)
    params = init_params(kp)

    batch = 13   # exercises the grid (2 tiles) and the padded tail path
    x = jax.random.uniform(kx, (batch, 1), jnp.float32, 0.0, 10.0)

    y = net_forward(x, params, block_m=8)
    jax.block_until_ready(y)

    # Matched reference (same bf16 fc2 weights / f32 accumulation).
    w1, b1, w2_bf16, b2, w3_row, b3 = params
    h1 = jnp.maximum(x * w1 + b1, 0.0)
    h2 = jnp.maximum(
        jnp.dot(h1.astype(jnp.bfloat16), w2_bf16,
                preferred_element_type=jnp.float32) + b2, 0.0)
    ref = jnp.sum(h2 * w3_row, axis=-1, keepdims=True) + b3[0]

    # Full-f32 reference (original PyTorch semantics) as a loose sanity check.
    r32 = jnp.maximum(x @ w1 + b1, 0.0)
    r32 = jnp.maximum(r32 @ w2_bf16.astype(jnp.float32) + b2, 0.0)
    r32 = r32 @ w3_row.T + b3[0]

    assert y.shape == (batch, 1)
    assert jnp.allclose(y, ref, atol=1e-2, rtol=1e-3)
    assert jnp.allclose(y, r32, atol=1.0, rtol=1e-1)

    print("KERNEL_OK")
</pallas_src>

<mosaic_0001>
module attributes {stable_mosaic.version = 11 : i64} {
  func.func @mlp_kernel(%arg0: i32, %arg1: memref<8x1xf32, #tpu.memory_space<vmem>>, %arg2: memref<1x128xf32, #tpu.memory_space<vmem>>, %arg3: memref<1x128xf32, #tpu.memory_space<vmem>>, %arg4: memref<128x128xbf16, #tpu.memory_space<vmem>>, %arg5: memref<1x128xf32, #tpu.memory_space<vmem>>, %arg6: memref<1x128xf32, #tpu.memory_space<vmem>>, %arg7: memref<1xf32, #tpu.memory_space<smem>>, %arg8: memref<8x1xf32, #tpu.memory_space<vmem>>) attributes {dimension_semantics = [#tpu.dimension_semantics<parallel>], iteration_bounds = array<i64: 2>, scalar_prefetch = 0 : i64, scratch_operands = 0 : i64, tpu.core_type = #tpu.core_type<tc>, window_params = [{transform_indices = @transform_0, window_bounds = array<i64: 8, 1>}, {pipeline_mode = #tpu.pipeline_mode<synchronous>, transform_indices = @transform_1, window_bounds = array<i64: 1, 128>}, {pipeline_mode = #tpu.pipeline_mode<synchronous>, transform_indices = @transform_2, window_bounds = array<i64: 1, 128>}, {pipeline_mode = #tpu.pipeline_mode<synchronous>, transform_indices = @transform_3, window_bounds = array<i64: 128, 128>}, {pipeline_mode = #tpu.pipeline_mode<synchronous>, transform_indices = @transform_4, window_bounds = array<i64: 1, 128>}, {pipeline_mode = #tpu.pipeline_mode<synchronous>, transform_indices = @transform_5, window_bounds = array<i64: 1, 128>}, {transform_indices = @transform_6, window_bounds = array<i64: 1>}, {transform_indices = @transform_7, window_bounds = array<i64: 8, 1>}]} {
    %c0 = arith.constant 0 : index
    %c0_0 = arith.constant 0 : index
    %0 = vector.load %arg1[%c0, %c0_0] : memref<8x1xf32, #tpu.memory_space<vmem>>, vector<8x1xf32>
    %c0_1 = arith.constant 0 : index
    %c0_2 = arith.constant 0 : index
    %1 = vector.load %arg2[%c0_1, %c0_2] : memref<1x128xf32, #tpu.memory_space<vmem>>, vector<1x128xf32>
    %2 = vector.broadcast %0 : vector<8x1xf32> to vector<8x128xf32>
    %3 = vector.broadcast %1 : vector<1x128xf32> to vector<8x128xf32>
    %4 = arith.mulf %2, %3 : vector<8x128xf32>
    %c0_3 = arith.constant 0 : index
    %c0_4 = arith.constant 0 : index
    %5 = vector.load %arg3[%c0_3, %c0_4] : memref<1x128xf32, #tpu.memory_space<vmem>>, vector<1x128xf32>
    %6 = vector.broadcast %5 : vector<1x128xf32> to vector<8x128xf32>
    %7 = arith.addf %4, %6 : vector<8x128xf32>
    %cst = arith.constant 0.000000e+00 : f32
    %8 = vector.broadcast %cst : f32 to vector<8x128xf32>
    %9 = arith.maximumf %7, %8 : vector<8x128xf32>
    %10 = arith.truncf %9 : vector<8x128xf32> to vector<8x128xbf16>
    %c0_5 = arith.constant 0 : index
    %c0_6 = arith.constant 0 : index
    %11 = vector.load %arg4[%c0_5, %c0_6] : memref<128x128xbf16, #tpu.memory_space<vmem>>, vector<128x128xbf16>
    %cst_7 = arith.constant dense<0.000000e+00> : vector<8x128xf32>
    %12 = tpu.matmul %10, %11, %cst_7 {dimension_numbers = #tpu.dot_dimension_numbers<[1], [0], [0], [1], [0, 0, 1, 1], [], []>} : vector<8x128xbf16>, vector<128x128xbf16>, vector<8x128xf32> -> vector<8x128xf32>
    %c0_8 = arith.constant 0 : index
    %c0_9 = arith.constant 0 : index
    %13 = vector.load %arg5[%c0_8, %c0_9] : memref<1x128xf32, #tpu.memory_space<vmem>>, vector<1x128xf32>
    %14 = vector.broadcast %13 : vector<1x128xf32> to vector<8x128xf32>
    %15 = arith.addf %12, %14 : vector<8x128xf32>
    %cst_10 = arith.constant 0.000000e+00 : f32
    %16 = vector.broadcast %cst_10 : f32 to vector<8x128xf32>
    %17 = arith.maximumf %15, %16 : vector<8x128xf32>
    %c0_11 = arith.constant 0 : index
    %c0_12 = arith.constant 0 : index
    %18 = vector.load %arg6[%c0_11, %c0_12] : memref<1x128xf32, #tpu.memory_space<vmem>>, vector<1x128xf32>
    %19 = vector.broadcast %18 : vector<1x128xf32> to vector<8x128xf32>
    %20 = arith.mulf %17, %19 : vector<8x128xf32>
    %cst_13 = arith.constant dense<0.000000e+00> : vector<8xf32>
    %21 = vector.multi_reduction <add>, %20, %cst_13 [1] : vector<8x128xf32> to vector<8xf32>
    %22 = vector.shape_cast %21 : vector<8xf32> to vector<8x1xf32>
    %c0_14 = arith.constant 0 : index
    %23 = memref.load %arg7[%c0_14] : memref<1xf32, #tpu.memory_space<smem>>
    %24 = vector.broadcast %23 : f32 to vector<8x1xf32>
    %25 = arith.addf %22, %24 : vector<8x1xf32>
    %c0_15 = arith.constant 0 : index
    %c0_16 = arith.constant 0 : index
    %26 = vector.load %arg8[%c0_15, %c0_16] : memref<8x1xf32, #tpu.memory_space<vmem>>, vector<8x1xf32>
    tpu.vector_store %arg8[%c0_15, %c0_16], %25 {strides = array<i32>} : memref<8x1xf32, #tpu.memory_space<vmem>>, vector<8x1xf32>,
    return
  }
  func.func @transform_0(%arg0: i32) -> (i32, i32) {
    %c0_i32 = arith.constant 0 : i32
    %c0_i32_0 = arith.constant 0 : i32
    return %arg0, %c0_i32 : i32, i32
  }
  func.func @transform_1(%arg0: i32) -> (i32, i32) {
    %c0_i32 = arith.constant 0 : i32
    %c0_i32_0 = arith.constant 0 : i32
    %c0_i32_1 = arith.constant 0 : i32
    return %c0_i32, %c0_i32_0 : i32, i32
  }
  func.func @transform_2(%arg0: i32) -> (i32, i32) {
    %c0_i32 = arith.constant 0 : i32
    %c0_i32_0 = arith.constant 0 : i32
    %c0_i32_1 = arith.constant 0 : i32
    return %c0_i32, %c0_i32_0 : i32, i32
  }
  func.func @transform_3(%arg0: i32) -> (i32, i32) {
    %c0_i32 = arith.constant 0 : i32
    %c0_i32_0 = arith.constant 0 : i32
    %c0_i32_1 = arith.constant 0 : i32
    return %c0_i32, %c0_i32_0 : i32, i32
  }
  func.func @transform_4(%arg0: i32) -> (i32, i32) {
    %c0_i32 = arith.constant 0 : i32
    %c0_i32_0 = arith.constant 0 : i32
    %c0_i32_1 = arith.constant 0 : i32
    return %c0_i32, %c0_i32_0 : i32, i32
  }
  func.func @transform_5(%arg0: i32) -> (i32, i32) {
    %c0_i32 = arith.constant 0 : i32
    %c0_i32_0 = arith.constant 0 : i32
    %c0_i32_1 = arith.constant 0 : i32
    return %c0_i32, %c0_i32_0 : i32, i32
  }
  func.func @transform_6(%arg0: i32) -> i32 {
    %c0_i32 = arith.constant 0 : i32
    %c0_i32_0 = arith.constant 0 : i32
    return %c0_i32 : i32
  }
  func.func @transform_7(%arg0: i32) -> (i32, i32) {
    %c0_i32 = arith.constant 0 : i32
    %c0_i32_0 = arith.constant 0 : i32
    return %arg0, %c0_i32 : i32, i32
  }
}

</mosaic_0001>

<llo_original>
// kernel: tpu_custom_call.1
$region0: #{tpu_custom_call.1}
  #allocation0 [shape = 'u32[]', space=smem, size = 0x4, offset = 0x4, fixed_abs, tag = 'smem constant byte address 0x4 - core index']
  #allocation1 [shape = 'u32[72,128]{1,0:T(1,128)}', space=vmem, size = 0x9000, scoped, tag = 'internal scratch']
  #allocation2 [shape = 'f32[1]{0:T(128)S(6)}', space=smem, size = 0x200, scoped, tag = 'scoped memory for tpu_custom_call.1']
  %s0 = inlined_call_operand.vmem [shape: f32[16,1], index: 0, kind: input, shape index: {}]
  %s1 = inlined_call_operand.vmem [shape: f32[1,128], index: 1, kind: input, shape index: {}]
  %s2 = inlined_call_operand.vmem [shape: f32[1,128], index: 2, kind: input, shape index: {}]
  %s3 = inlined_call_operand.hbm [shape: bf16[128,128], index: 3, kind: input, shape index: {}]
  %s4 = inlined_call_operand.vmem [shape: f32[1,128], index: 4, kind: input, shape index: {}]
  %s5 = inlined_call_operand.vmem [shape: f32[1,128], index: 5, kind: input, shape index: {}]
  %s6 = inlined_call_operand.<no memory space> [shape: f32[1], index: 6, kind: input, shape index: {}]
  %s7 = inlined_call_operand.vmem [shape: f32[16,1], index: 7, kind: output, shape index: {}]
  %s8 = sld [smem:[#allocation0]]
  $region65: #{tpu_custom_call.1} parent=0
    _
  %s10 = ssub.s32 1, %s8
  %s11 = scalar_select 0, %s10, %s8
  %12 = sst [smem:[#allocation2]] %s6
  $region1: #{tpu_custom_call.1} parent=0
    #allocation3 [shape = 'u8[32768]{0}', space=vmem, size = 0x8000, scoped, tag = 'input window, operand 3, single buffered']
    #allocation4 [shape = 's32[2]{0}', space=sflag, size = 0x8, scoped, tag = 'scoped memory for tpu_custom_call.1']
    %13 = vsyncpa [#allocation4], 0
    loop: start=0, step=1, limit=4
    $region2: #{tpu_custom_call.1} parent=1 // loop_pre_header
      _
    $region3: #{tpu_custom_call.1} parent=1 // loop_header
      %s15 = sphi 0, %s19
      %p16 = scmp.ge.s32.totalorder %s15, 4
      %s25 = sphi 0, %s27
      %s28 = sphi 0, %s25
      %s29 = sphi 0, %s28
      %s45 = sphi 0, %s29
      %s49 = sphi 0, %s49
      %s51 = sphi 0, %s49
      %s52 = sphi 0, %s51
      %s66 = sphi 0, %s52
      %s70 = sphi 0, %s70
      %s72 = sphi 0, %s70
      %s73 = sphi 0, %s72
      %s87 = sphi 0, %s73
      %s91 = sphi 0, %s91
      %s93 = sphi 0, %s91
      %s94 = sphi 0, %s93
      %s108 = sphi 0, %s94
      %s112 = sphi 0, %s112
      %s114 = sphi 0, %s112
      %s115 = sphi 0, %s114
      %s129 = sphi 0, %s115
      %s133 = sphi 0, %s133
      %s135 = sphi 0, %s133
      %s136 = sphi 0, %s135
      %s150 = sphi 0, %s136
      %s154 = sphi 0, %s154
      %s156 = sphi 0, %s154
      %s157 = sphi 0, %s156
      %s171 = sphi 0, %s157
      %s177 = sphi 0, %s179
      %s180 = sphi 0, %s177
      %s181 = sphi 0, %s180
      %s197 = sphi 0, %s181
    $region4: #{tpu_custom_call.1} parent=1 // loop_header_branch
      %18 = sbr.rel (%p16) target = $region8
    $region5: #{tpu_custom_call.1} parent=1 // loop_body
      %s20 = ssub.s32 %s15, 1
      %s21 = ssub.s32 %s15, 2
      %s22 = sadd.s32 %s15, 1
      %s23 = ssub.s32 %s15, %s22
      %p24 = scmp.eq.s32.totalorder %s23, 0
      %s26 = sadd.s32 %s25, 1
      %s27 = scalar_select %p24, %s25, %s26
      %p30 = pneg %p24
      %p31 = scmp.eq.s32.totalorder %s15, 1
      %p32 = por %p30, %p31
      %p33 = scmp.ne.s32.totalorder %s25, %s28
      %p34 = scmp.eq.s32.totalorder %s15, 0
      %p35 = por %p33, %p34
      %p36 = scmp.ne.s32.totalorder %s25, %s28
      %p37 = scmp.eq.s32.totalorder %s20, 1
      %p38 = por %p36, %p37
      %p39 = scmp.ne.s32.totalorder %s28, %s29
      %p40 = scmp.eq.s32.totalorder %s20, 0
      %p41 = por %p39, %p40
      %p42 = scmp.ne.s32.totalorder %s28, %s29
      %p43 = scmp.eq.s32.totalorder %s21, 1
      %p44 = por %p42, %p43
      %p46 = scmp.ne.s32.totalorder %s29, %s45
      %p47 = scmp.eq.s32.totalorder %s21, 0
      %p48 = por %p46, %p47
      %s50 = sadd.s32 %s49, 1
      %p53 = scmp.eq.s32.totalorder %s15, 1
      %p54 = scmp.ne.s32.totalorder %s49, %s51
      %p55 = scmp.eq.s32.totalorder %s15, 0
      %p56 = por %p54, %p55
      %p57 = scmp.ne.s32.totalorder %s49, %s51
      %p58 = scmp.eq.s32.totalorder %s20, 1
      %p59 = por %p57, %p58
      %p60 = scmp.ne.s32.totalorder %s51, %s52
      %p61 = scmp.eq.s32.totalorder %s20, 0
      %p62 = por %p60, %p61
      %p63 = scmp.ne.s32.totalorder %s51, %s52
      %p64 = scmp.eq.s32.totalorder %s21, 1
      %p65 = por %p63, %p64
      %p67 = scmp.ne.s32.totalorder %s52, %s66
      %p68 = scmp.eq.s32.totalorder %s21, 0
      %p69 = por %p67, %p68
      %s71 = sadd.s32 %s70, 1
      %p74 = scmp.eq.s32.totalorder %s15, 1
      %p75 = scmp.ne.s32.totalorder %s70, %s72
      %p76 = scmp.eq.s32.totalorder %s15, 0
      %p77 = por %p75, %p76
      %p78 = scmp.ne.s32.totalorder %s70, %s72
      %p79 = scmp.eq.s32.totalorder %s20, 1
      %p80 = por %p78, %p79
      %p81 = scmp.ne.s32.totalorder %s72, %s73
      %p82 = scmp.eq.s32.totalorder %s20, 0
      %p83 = por %p81, %p82
      %p84 = scmp.ne.s32.totalorder %s72, %s73
      %p85 = scmp.eq.s32.totalorder %s21, 1
      %p86 = por %p84, %p85
      %p88 = scmp.ne.s32.totalorder %s73, %s87
      %p89 = scmp.eq.s32.totalorder %s21, 0
      %p90 = por %p88, %p89
      %s92 = sadd.s32 %s91, 1
      %p95 = scmp.eq.s32.totalorder %s15, 1
      %p96 = scmp.ne.s32.totalorder %s91, %s93
      %p97 = scmp.eq.s32.totalorder %s15, 0
      %p98 = por %p96, %p97
      %p99 = scmp.ne.s32.totalorder %s91, %s93
      %p100 = scmp.eq.s32.totalorder %s20, 1
      %p101 = por %p99, %p100
      %p102 = scmp.ne.s32.totalorder %s93, %s94
      %p103 = scmp.eq.s32.totalorder %s20, 0
      %p104 = por %p102, %p103
      %p105 = scmp.ne.s32.totalorder %s93, %s94
      %p106 = scmp.eq.s32.totalorder %s21, 1
      %p107 = por %p105, %p106
      %p109 = scmp.ne.s32.totalorder %s94, %s108
      %p110 = scmp.eq.s32.totalorder %s21, 0
      %p111 = por %p109, %p110
      %s113 = sadd.s32 %s112, 1
      %p116 = scmp.eq.s32.totalorder %s15, 1
      %p117 = scmp.ne.s32.totalorder %s112, %s114
      %p118 = scmp.eq.s32.totalorder %s15, 0
      %p119 = por %p117, %p118
      %p120 = scmp.ne.s32.totalorder %s112, %s114
      %p121 = scmp.eq.s32.totalorder %s20, 1
      %p122 = por %p120, %p121
      %p123 = scmp.ne.s32.totalorder %s114, %s115
      %p124 = scmp.eq.s32.totalorder %s20, 0
      %p125 = por %p123, %p124
      %p126 = scmp.ne.s32.totalorder %s114, %s115
      %p127 = scmp.eq.s32.totalorder %s21, 1
      %p128 = por %p126, %p127
      %p130 = scmp.ne.s32.totalorder %s115, %s129
      %p131 = scmp.eq.s32.totalorder %s21, 0
      %p132 = por %p130, %p131
      %s134 = sadd.s32 %s133, 1
      %p137 = scmp.eq.s32.totalorder %s15, 1
      %p138 = scmp.ne.s32.totalorder %s133, %s135
      %p139 = scmp.eq.s32.totalorder %s15, 0
      %p140 = por %p138, %p139
      %p141 = scmp.ne.s32.totalorder %s133, %s135
      %p142 = scmp.eq.s32.totalorder %s20, 1
      %p143 = por %p141, %p142
      %p144 = scmp.ne.s32.totalorder %s135, %s136
      %p145 = scmp.eq.s32.totalorder %s20, 0
      %p146 = por %p144, %p145
      %p147 = scmp.ne.s32.totalorder %s135, %s136
      %p148 = scmp.eq.s32.totalorder %s21, 1
      %p149 = por %p147, %p148
      %p151 = scmp.ne.s32.totalorder %s136, %s150
      %p152 = scmp.eq.s32.totalorder %s21, 0
      %p153 = por %p151, %p152
      %s155 = sadd.s32 %s154, 1
      %p158 = scmp.eq.s32.totalorder %s15, 1
      %p159 = scmp.ne.s32.totalorder %s154, %s156
      %p160 = scmp.eq.s32.totalorder %s15, 0
      %p161 = por %p159, %p160
      %p162 = scmp.ne.s32.totalorder %s154, %s156
      %p163 = scmp.eq.s32.totalorder %s20, 1
      %p164 = por %p162, %p163
      %p165 = scmp.ne.s32.totalorder %s156, %s157
      %p166 = scmp.eq.s32.totalorder %s20, 0
      %p167 = por %p165, %p166
      %p168 = scmp.ne.s32.totalorder %s156, %s157
      %p169 = scmp.eq.s32.totalorder %s21, 1
      %p170 = por %p168, %p169
      %p172 = scmp.ne.s32.totalorder %s157, %s171
      %p173 = scmp.eq.s32.totalorder %s21, 0
      %p174 = por %p172, %p173
      %s175 = ssub.s32 %s15, %s22
      %p176 = scmp.eq.s32.totalorder %s175, 0
      %s178 = sadd.s32 %s177, 1
      %s179 = scalar_select %p176, %s177, %s178
      %p182 = pneg %p176
      %p183 = scmp.eq.s32.totalorder %s15, 1
      %p184 = por %p182, %p183
      %p185 = scmp.ne.s32.totalorder %s177, %s180
      %p186 = scmp.eq.s32.totalorder %s15, 0
      %p187 = por %p185, %p186
      %p188 = scmp.ne.s32.totalorder %s177, %s180
      %p189 = scmp.eq.s32.totalorder %s20, 1
      %p190 = por %p188, %p189
      %p191 = scmp.ne.s32.totalorder %s180, %s181
      %p192 = scmp.eq.s32.totalorder %s20, 0
      %p193 = por %p191, %p192
      %p194 = scmp.ne.s32.totalorder %s180, %s181
      %p195 = scmp.eq.s32.totalorder %s21, 1
      %p196 = por %p194, %p195
      %p198 = scmp.ne.s32.totalorder %s181, %s197
      %p199 = scmp.eq.s32.totalorder %s21, 0
      %p200 = por %p198, %p199
      %p201 = scmp.le.s32.totalorder 1, %s15
      %p202 = scmp.lt.s32.totalorder %s15, 3
      %p203 = pnand %p201, %p202
      %p204 = pneg %p203
      // Predicated region
      $region9: #{tpu_custom_call.1} parent=5 // pred_check
        _
      $region10: #{tpu_custom_call.1} parent=5 // pred_check_branch
        %206 = sbr.rel (%p203) target = $region12
      $region11: #{tpu_custom_call.1} parent=5 // pred_region
        %s207 = ssub.s32 %s15, 1
        // Predicated region
        $region13: #{tpu_custom_call.1} parent=11 // pred_check
          %p208 = pneg %p62
        $region14: #{tpu_custom_call.1} parent=11 // pred_check_branch
          %210 = sbr.rel (%p208) target = $region16
        $region15: #{tpu_custom_call.1} parent=11 // pred_region
          _
        $region16: #{tpu_custom_call.1} parent=11 // pred_fallthru
          _
        // Predicated region
        $region17: #{tpu_custom_call.1} parent=11 // pred_check
          %p211 = pneg %p83
        $region18: #{tpu_custom_call.1} parent=11 // pred_check_branch
          %213 = sbr.rel (%p211) target = $region20
        $region19: #{tpu_custom_call.1} parent=11 // pred_region
          _
        $region20: #{tpu_custom_call.1} parent=11 // pred_fallthru
          _
        // Predicated region
        $region21: #{tpu_custom_call.1} parent=11 // pred_check
          %p214 = pneg %p104
        $region22: #{tpu_custom_call.1} parent=11 // pred_check_branch
          %216 = sbr.rel (%p214) target = $region24
        $region23: #{tpu_custom_call.1} parent=11 // pred_region
          %218 = vsyncadd [#allocation4], 0
          %s219 = sshll.u32 %s3, 4
          %s220 = int_to_ptr.hbm [resolvable:$true] %s219
          %s221 = sshll.u32 [#allocation3], 4
          %s222 = int_to_ptr.vmem [resolvable:$true] %s221
          %227 = dma.hbm_to_vmem [thread:$0]  %s220, 1024, %s222, [#allocation4], 64, 64, 4
        $region24: #{tpu_custom_call.1} parent=11 // pred_fallthru
          _
        // Predicated region
        $region25: #{tpu_custom_call.1} parent=11 // pred_check
          %p228 = pneg %p125
        $region26: #{tpu_custom_call.1} parent=11 // pred_check_branch
          %230 = sbr.rel (%p228) target = $region28
        $region27: #{tpu_custom_call.1} parent=11 // pred_region
          _
        $region28: #{tpu_custom_call.1} parent=11 // pred_fallthru
          _
        // Predicated region
        $region29: #{tpu_custom_call.1} parent=11 // pred_check
          %p231 = pneg %p146
        $region30: #{tpu_custom_call.1} parent=11 // pred_check_branch
          %233 = sbr.rel (%p231) target = $region32
        $region31: #{tpu_custom_call.1} parent=11 // pred_region
          _
        $region32: #{tpu_custom_call.1} parent=11 // pred_fallthru
          _
        // Predicated region
        $region33: #{tpu_custom_call.1} parent=11 // pred_check
          %p234 = pneg %p167
        $region34: #{tpu_custom_call.1} parent=11 // pred_check_branch
          %236 = sbr.rel (%p234) target = $region36
        $region35: #{tpu_custom_call.1} parent=11 // pred_region
          _
        $region36: #{tpu_custom_call.1} parent=11 // pred_fallthru
          _
      $region12: #{tpu_custom_call.1} parent=5 // pred_fallthru
        _
      %p237 = scmp.lt.s32.totalorder %s15, 2
      // Predicated region
      $region37: #{tpu_custom_call.1} parent=5 // pred_check
        %p238 = pneg %p237
      $region38: #{tpu_custom_call.1} parent=5 // pred_check_branch
        %240 = sbr.rel (%p238) target = $region40
      $region39: #{tpu_custom_call.1} parent=5 // pred_region
        // Predicated region
        $region41: #{tpu_custom_call.1} parent=39 // pred_check
          %p241 = pneg %p35
        $region42: #{tpu_custom_call.1} parent=39 // pred_check_branch
          %243 = sbr.rel (%p241) target = $region44
        $region43: #{tpu_custom_call.1} parent=39 // pred_region
          %p244 = scmp.lt.s32.totalorder %s15, 1
          %s245 = scalar_select %p244, %s15, 1
          %s246 = smul.addr %s245, 8
          %s247 = scalar_lea.vmem %s0, %s246
        $region44: #{tpu_custom_call.1} parent=39 // pred_fallthru
          _
      $region40: #{tpu_custom_call.1} parent=5 // pred_fallthru
        _
      %p248 = scmp.le.s32.totalorder 1, %s15
      %p249 = scmp.lt.s32.totalorder %s15, 3
      %p250 = pnand %p248, %p249
      %p251 = pneg %p250
      // Predicated region
      $region45: #{tpu_custom_call.1} parent=5 // pred_check
        _
      $region46: #{tpu_custom_call.1} parent=5 // pred_check_branch
        %253 = sbr.rel (%p250) target = $region48
      $region47: #{tpu_custom_call.1} parent=5 // pred_region
        %s254 = ssub.s32 %s15, 1
        // Predicated region
        $region49: #{tpu_custom_call.1} parent=47 // pred_check
          %p255 = pneg %p104
        $region50: #{tpu_custom_call.1} parent=47 // pred_check_branch
          %257 = sbr.rel (%p255) target = $region52
        $region51: #{tpu_custom_call.1} parent=47 // pred_region
          %259 = dma.done [#allocation4], 1024
        $region52: #{tpu_custom_call.1} parent=47 // pred_fallthru
          _
        %p260 = scmp.lt.s32.totalorder %s20, 1
        %s261 = scalar_select %p260, %s20, 1
        %s262 = smul.addr %s261, 8
        %s263 = scalar_lea.vmem %s0, %s262
        %p264 = pneg %p41
        %p265 = pneg %p38
        %p266 = pneg %p62
        %p267 = pneg %p59
        %p268 = pneg %p83
        %p269 = pneg %p80
        %p270 = pneg %p104
        %p271 = pneg %p101
        %p272 = pneg %p125
        %p273 = pneg %p122
        %p274 = pneg %p146
        %p275 = pneg %p143
        %p276 = pneg %p167
        %p277 = pneg %p164
        %p278 = pneg %p193
        %p279 = pneg %p190
        %p280 = scmp.lt.s32.totalorder %s20, 1
        %s281 = scalar_select %p280, %s20, 1
        %s282 = smul.addr %s281, 8
        %s283 = scalar_lea.vmem %s7, %s282
        %p284 = scmp.lt.s32.totalorder %s20, 1
        %s285 = scalar_select %p284, %s20, 1
        %s286 = smul.addr %s285, 8
        %s287 = scalar_lea.vmem %s0, %s286
        %p288 = scmp.lt.s32.totalorder %s20, 1
        %s289 = scalar_select %p288, %s20, 1
        %s290 = smul.addr %s289, 8
        %s291 = scalar_lea.vmem %s7, %s290
        %v292 = vld [vmem:[%s287] sm:$0xff]
        %v293 = vld [vmem:[%s1] sm:$0x1]
        %295 = vset.pattern.permute.xlu0 0
        %296 = vperm.xlu0 %295, %v292
        %v297 = vpop.permute.xlu0 %296
        %v300 = vperm.slane %v293, 0
        %v302 = vmul.f32 %v297, %v300
        %v303 = vld [vmem:[%s2] sm:$0x1]
        %v305 = vperm.slane %v303, 0
        %v307 = vadd.f32 %v302, %v305
        %v308 = vmax.f32 %v307, 0.0
        %v309 = vpack.c.bf16 %v308, %v308
        %v310 = vld [vmem:[#allocation3] sm:$0xf]
        %v311 = vld [vmem:[#allocation3 + $0x4] sm:$0xf]
        %v312 = vld [vmem:[#allocation3 + $0x8] sm:$0xf]
        %v313 = vld [vmem:[#allocation3 + $0xc] sm:$0xf]
        %v314 = vld [vmem:[#allocation3 + $0x10] sm:$0xf]
        %v315 = vld [vmem:[#allocation3 + $0x14] sm:$0xf]
        %v316 = vld [vmem:[#allocation3 + $0x18] sm:$0xf]
        %v317 = vld [vmem:[#allocation3 + $0x1c] sm:$0xf]
        %v318 = vld [vmem:[#allocation3 + $0x20] sm:$0xf]
        %v319 = vld [vmem:[#allocation3 + $0x24] sm:$0xf]
        %v320 = vld [vmem:[#allocation3 + $0x28] sm:$0xf]
        %v321 = vld [vmem:[#allocation3 + $0x2c] sm:$0xf]
        %v322 = vld [vmem:[#allocation3 + $0x30] sm:$0xf]
        %v323 = vld [vmem:[#allocation3 + $0x34] sm:$0xf]
        %v324 = vld [vmem:[#allocation3 + $0x38] sm:$0xf]
        %v325 = vld [vmem:[#allocation3 + $0x3c] sm:$0xf]
        %v326 = vld [vmem:[%s4] sm:$0x1]
        %v328 = vperm.slane %v326, 0
        %v346 = vunpack.c.l.b16 %v310
        %v347 = vunpack.c.l.b16 %v311
        %v348 = vunpack.c.l.b16 %v312
        %v349 = vunpack.c.l.b16 %v313
        %v350 = vunpack.c.l.b16 %v314
        %v351 = vunpack.c.l.b16 %v315
        %v352 = vunpack.c.l.b16 %v316
        %v353 = vunpack.c.l.b16 %v317
        %v354 = vunpack.c.l.b16 %v318
        %v355 = vunpack.c.l.b16 %v319
        %v356 = vunpack.c.l.b16 %v320
        %v357 = vunpack.c.l.b16 %v321
        %v358 = vunpack.c.l.b16 %v322
        %v359 = vunpack.c.l.b16 %v323
        %v360 = vunpack.c.l.b16 %v324
        %v361 = vunpack.c.l.b16 %v325
        %v362 = vpack.c.b16 %v347, %v346
        %v363 = vpack.c.b16 %v349, %v348
        %v364 = vpack.c.b16 %v351, %v350
        %v365 = vpack.c.b16 %v353, %v352
        %v366 = vpack.c.b16 %v355, %v354
        %v367 = vpack.c.b16 %v357, %v356
        %v368 = vpack.c.b16 %v359, %v358
        %v369 = vpack.c.b16 %v361, %v360
        %378 = vmatpush.bf16.msra.mxu0 %v369
        %379 = vmatpush.bf16.msra.mxu0 %v368
        %380 = vmatpush.bf16.msra.mxu0 %v367
        %381 = vmatpush.bf16.msra.mxu0 %v366
        %382 = vmatpush.bf16.msra.mxu0 %v365
        %383 = vmatpush.bf16.msra.mxu0 %v364
        %384 = vmatpush.bf16.msra.mxu0 %v363
        %385 = vmatpush.bf16.msra.mxu0 %v362
        %386 = vmatmul.bf16.gmra.mxu0 %v309
        %v387 = vpop.f32.mrf.mxu0
        %v388 = vadd.f32 %v328, %v387
        %v389 = vpop.f32.mrf.mxu0
        %390 = vdwg.mxu0
        %v391 = vmax.f32 %v388, 0.0
        %v392 = vld [vmem:[%s5] sm:$0x1]
        %v394 = vperm.slane %v392, 0
        %v396 = vmul.f32 %v391, %v394
        %397 = vadd.xlane.f32.xlu0 %v396
        %v398 = vpop.xlane.xlu0 %397
        %s399 = sld [smem:[#allocation2]]
        %v400 = vstv %s399
        %v401 = vadd.f32 %v398, %v400
        %vm402 = vcmask 7168
        %403 = vst.msk [vmem:[%s291] sm:$0xff] %vm402, %v401
        %p404 = scmp.lt.s32.totalorder %s20, 1
        %s405 = scalar_select %p404, %s20, 1
        %s406 = smul.addr %s405, 8
        %s407 = scalar_lea.vmem %s7, %s406
        // Predicated region
        $region53: #{tpu_custom_call.1} parent=47 // pred_check
          %p408 = pneg %p190
        $region54: #{tpu_custom_call.1} parent=47 // pred_check_branch
          %410 = sbr.rel (%p408) target = $region56
        $region55: #{tpu_custom_call.1} parent=47 // pred_region
          _
        $region56: #{tpu_custom_call.1} parent=47 // pred_fallthru
          _
      $region48: #{tpu_custom_call.1} parent=5 // pred_fallthru
        _
      %p411 = scmp.le.s32.totalorder 2, %s15
      // Predicated region
      $region57: #{tpu_custom_call.1} parent=5 // pred_check
        %p412 = pneg %p411
      $region58: #{tpu_custom_call.1} parent=5 // pred_check_branch
        %414 = sbr.rel (%p412) target = $region60
      $region59: #{tpu_custom_call.1} parent=5 // pred_region
        %s415 = ssub.s32 %s15, 2
        // Predicated region
        $region61: #{tpu_custom_call.1} parent=59 // pred_check
          %p416 = pneg %p196
        $region62: #{tpu_custom_call.1} parent=59 // pred_check_branch
          %418 = sbr.rel (%p416) target = $region64
        $region63: #{tpu_custom_call.1} parent=59 // pred_region
          %p419 = scmp.lt.s32.totalorder %s21, 1
          %s420 = scalar_select %p419, %s21, 1
          %s421 = smul.addr %s420, 8
          %s422 = scalar_lea.vmem %s7, %s421
        $region64: #{tpu_custom_call.1} parent=59 // pred_fallthru
          _
      $region60: #{tpu_custom_call.1} parent=5 // pred_fallthru
        _
    $region6: #{tpu_custom_call.1} parent=1 // loop_footer
      %s19 = sadd.s32 1, %s15
    $region7: #{tpu_custom_call.1} parent=1 // loop_footer_branch
      %14 = sbr.rel target = $region3
    $region8: #{tpu_custom_call.1} parent=1 // loop_exit
      _
    %423 = vsyncpa [#allocation4], 1
    %s424 = scalar_lea.sflag [#allocation4], 1
    %425 = vsyncpa %s424, 1

</llo_original>
